<compile_context>
chip_gen: v6e
topology: v6e:2x2x1
jax: 0.10.0
libtpu: 0.0.40
codegen_flags: <defaults>
</compile_context>

<pallas_src>
import functools

import jax
import jax.numpy as jnp
import numpy as np
from jax import lax
from jax.experimental import pallas as pl
from jax.experimental.pallas import tpu as pltpu


# ---------------------------------------------------------------------------
# Pallas kernel: fused (loc ++ cls) conv head as a single matmul + bias.
#   p_ref : (tm, K)   im2col patches (K = 9*Cin)
#   w_ref : (K,  Cp)  fused, Cout-padded weights (Cp multiple of 128)
#   b_ref : (1,  Cp)  fused, padded bias
#   o_ref : (tm, Cp)  lane-dense f32 output slab
# ---------------------------------------------------------------------------
def _fused_head_kernel(p_ref, w_ref, b_ref, o_ref):
    o_ref[...] = (
        jnp.dot(p_ref[...], w_ref[...], preferred_element_type=jnp.float32)
        + b_ref[...]
    ).astype(o_ref.dtype)


def _fused_head_matmul(patches, w_pad, b_pad):
    M, K = patches.shape
    Cp = w_pad.shape[1]
    # Split M across two "parallel" grid steps when it divides cleanly so both
    # v7x TensorCores get work; otherwise a single whole-array step.
    tm = M // 2 if (M % 16 == 0 and M >= 16) else M
    grid = (M // tm,)
    return pl.pallas_call(
        _fused_head_kernel,
        out_shape=jax.ShapeDtypeStruct((M, Cp), jnp.float32),
        grid=grid,
        in_specs=[
            pl.BlockSpec((tm, K), lambda i: (i, 0)),
            pl.BlockSpec((K, Cp), lambda i: (0, 0)),
            pl.BlockSpec((1, Cp), lambda i: (0, 0)),
        ],
        out_specs=pl.BlockSpec((tm, Cp), lambda i: (i, 0)),
        compiler_params=pltpu.CompilerParams(
            dimension_semantics=("parallel",)),
    )(patches, w_pad, b_pad)


# ---------------------------------------------------------------------------
# Glue (fused under jax.jit): im2col patches and weight packing.
# ---------------------------------------------------------------------------
def _im2col_3x3(x_nchw):
    """NCHW input -> (B*H*W, 9*Cin) patches for a 3x3 / stride 1 / pad 1 conv."""
    x = jnp.transpose(x_nchw, (0, 2, 3, 1))                    # NHWC
    B, H, W, Cin = x.shape
    xp = jnp.pad(x, ((0, 0), (1, 1), (1, 1), (0, 0)))
    taps = [xp[:, ky:ky + H, kx:kx + W, :]
            for ky in range(3) for kx in range(3)]              # tap-major
    patches = jnp.concatenate(taps, axis=-1)                    # (B,H,W,9*Cin)
    return patches.reshape(B * H * W, 9 * Cin)


def _pack_fused_head(w_loc, b_loc, w_cls, b_cls, cout_pad):
    """Pack loc+cls OIHW conv weights into one (9*Cin, cout_pad) matrix."""
    cin = w_loc.shape[1]

    def to_mat(w):  # (Cout,Cin,3,3) -> (9*Cin, Cout), row = (ky*3+kx)*Cin + cin
        return jnp.transpose(w, (2, 3, 1, 0)).reshape(9 * cin, w.shape[0])

    w_mat = jnp.concatenate([to_mat(w_loc), to_mat(w_cls)], axis=1)
    b_vec = jnp.concatenate([b_loc, b_cls])
    n_fused = w_mat.shape[1]
    w_pad = jnp.zeros((9 * cin, cout_pad), jnp.float32).at[:, :n_fused].set(w_mat)
    b_pad = jnp.zeros((1, cout_pad), jnp.float32).at[0, :n_fused].set(b_vec)
    return w_pad, b_pad


def _forward_impl(n_classes, fused2, fused3, block2, block3):
    n_loc = 2 * 4
    n_cls = 2 * n_classes

    def run_block(x_nchw, w_pad, b_pad):
        B, _, H, W = x_nchw.shape
        patches = _im2col_3x3(x_nchw)                          # (B*H*W, 9*Cin)
        y = _fused_head_matmul(patches, w_pad, b_pad)          # (B*H*W, Cp)
        y = y.reshape(B, H * W, -1)
        # NHWC conv output channel-sliced == permute(0,2,3,1).view(B,-1,·)
        loc = y[:, :, :n_loc].reshape(B, -1, 4)
        cls = y[:, :, n_loc:n_loc + n_cls].reshape(B, -1, n_classes)
        return loc, cls

    l2, c2 = run_block(block2, *fused2)
    l3, c3 = run_block(block3, *fused3)
    locs = jnp.concatenate([l2, l3], axis=1)
    classes_scores = jnp.concatenate([c2, c3], axis=1)
    return locs, classes_scores


# ---------------------------------------------------------------------------
# PredictionConvolutions forward.
# ---------------------------------------------------------------------------
class PredictionConvolutionsPallas:
    N_BOXES = 2

    def __init__(self, channels_for_block, n_classes, key):
        self.n_classes = n_classes
        self.params = {}
        keys = jax.random.split(key, 16)
        k = 0
        for i, cin in enumerate(channels_for_block):
            for kind, cout in (("loc", self.N_BOXES * 4),
                               ("cl", self.N_BOXES * n_classes)):
                w = 0.1 * jax.random.normal(keys[k], (cout, cin, 3, 3),
                                            jnp.float32)        # OIHW (PyTorch)
                b = 0.1 * jax.random.normal(keys[k + 1], (cout,), jnp.float32)
                self.params[f"{kind}_block{i}"] = (w, b)
                k += 2

        # Fused (loc ++ cls) im2col weights, only for the blocks that feed the
        # output (2 and 3). Cout zero-padded to a multiple of 128 for a
        # lane-dense kernel output.
        n_fused = self.N_BOXES * 4 + self.N_BOXES * n_classes
        cout_pad = ((n_fused + 127) // 128) * 128
        self._fused = {}
        for i in (2, 3):
            wl, bl = self.params[f"loc_block{i}"]
            wc, bc = self.params[f"cl_block{i}"]
            self._fused[i] = _pack_fused_head(wl, bl, wc, bc, cout_pad)

        self._jit_forward = jax.jit(
            functools.partial(_forward_impl, self.n_classes))

    def __call__(self, block0, block1, block2, block3):
        """Inputs are NCHW (PyTorch convention). Blocks 0/1 are convolved in
        the reference but their outputs are never used (only blocks 2,3 are
        concatenated), so they are skipped here (== XLA DCE under jit)."""
        return self._jit_forward(self._fused[2], self._fused[3],
                                 block2, block3)


# ---------------------------------------------------------------------------
# Reference (plain XLA) forward for a sanity check.
# ---------------------------------------------------------------------------
def _ref_forward(model, fmaps):
    n_classes = model.n_classes

    def conv(x, w, b):
        y = lax.conv_general_dilated(
            x, w, window_strides=(1, 1), padding="SAME",
            dimension_numbers=("NCHW", "OIHW", "NCHW"))
        return y + b[None, :, None, None]

    outs = {}
    for i in (2, 3):
        wl, bl = model.params[f"loc_block{i}"]
        wc, bc = model.params[f"cl_block{i}"]
        B = fmaps[i].shape[0]
        l = jnp.transpose(conv(fmaps[i], wl, bl), (0, 2, 3, 1)).reshape(B, -1, 4)
        c = jnp.transpose(conv(fmaps[i], wc, bc),
                          (0, 2, 3, 1)).reshape(B, -1, n_classes)
        outs[i] = (l, c)
    locs = jnp.concatenate([outs[2][0], outs[3][0]], axis=1)
    classes = jnp.concatenate([outs[2][1], outs[3][1]], axis=1)
    return locs, classes


if __name__ == "__main__":
    key = jax.random.PRNGKey(0)
    channels_for_block = [4, 8, 16, 8]
    n_classes = 6
    batch = 2

    model = PredictionConvolutionsPallas(channels_for_block, n_classes, key)

    ks = jax.random.split(jax.random.PRNGKey(1), 4)
    spatial = [16, 8, 8, 4]
    fmaps = [
        jax.random.normal(ks[i], (batch, channels_for_block[i], spatial[i],
                                  spatial[i]), jnp.float32)
        for i in range(4)
    ]

    locs, classes_scores = model(*fmaps)
    locs = jax.block_until_ready(locs)
    classes_scores = jax.block_until_ready(classes_scores)

    # Shape check (blocks 2,3 contribute H*W*n_boxes priors each).
    n_priors = spatial[2] * spatial[2] * 2 + spatial[3] * spatial[3] * 2
    assert locs.shape == (batch, n_priors, 4), locs.shape
    assert classes_scores.shape == (batch, n_priors, n_classes), \
        classes_scores.shape

    # Numerical sanity check of the full forward against XLA convs
    # (loose tol: MXU matmul path).
    ref_locs, ref_classes = _ref_forward(model, fmaps)
    np.testing.assert_allclose(np.asarray(locs), np.asarray(ref_locs),
                               rtol=2e-2, atol=2e-2)
    np.testing.assert_allclose(np.asarray(classes_scores),
                               np.asarray(ref_classes),
                               rtol=2e-2, atol=2e-2)

    print("KERNEL_OK")
</pallas_src>

<mosaic_0001>
module attributes {stable_mosaic.version = 11 : i64} {
  func.func @_fused_head_kernel(%arg0: i32, %arg1: memref<64x144xf32, #tpu.memory_space<vmem>>, %arg2: memref<144x128xf32, #tpu.memory_space<vmem>>, %arg3: memref<1x128xf32, #tpu.memory_space<vmem>>, %arg4: memref<64x128xf32, #tpu.memory_space<vmem>>) attributes {dimension_semantics = [#tpu.dimension_semantics<parallel>], iteration_bounds = array<i64: 2>, scalar_prefetch = 0 : i64, scratch_operands = 0 : i64, tpu.core_type = #tpu.core_type<tc>, window_params = [{transform_indices = @transform_0, window_bounds = array<i64: 64, 144>}, {pipeline_mode = #tpu.pipeline_mode<synchronous>, transform_indices = @transform_1, window_bounds = array<i64: 144, 128>}, {pipeline_mode = #tpu.pipeline_mode<synchronous>, transform_indices = @transform_2, window_bounds = array<i64: 1, 128>}, {transform_indices = @transform_3, window_bounds = array<i64: 64, 128>}]} {
    %c0 = arith.constant 0 : index
    %c0_0 = arith.constant 0 : index
    %0 = vector.load %arg1[%c0, %c0_0] : memref<64x144xf32, #tpu.memory_space<vmem>>, vector<64x144xf32>
    %c0_1 = arith.constant 0 : index
    %c0_2 = arith.constant 0 : index
    %1 = vector.load %arg2[%c0_1, %c0_2] : memref<144x128xf32, #tpu.memory_space<vmem>>, vector<144x128xf32>
    %cst = arith.constant dense<0.000000e+00> : vector<64x128xf32>
    %2 = tpu.matmul %0, %1, %cst {dimension_numbers = #tpu.dot_dimension_numbers<[1], [0], [0], [1], [0, 0, 1, 1], [], []>} : vector<64x144xf32>, vector<144x128xf32>, vector<64x128xf32> -> vector<64x128xf32>
    %c0_3 = arith.constant 0 : index
    %c0_4 = arith.constant 0 : index
    %3 = vector.load %arg3[%c0_3, %c0_4] : memref<1x128xf32, #tpu.memory_space<vmem>>, vector<1x128xf32>
    %4 = vector.broadcast %3 : vector<1x128xf32> to vector<64x128xf32>
    %5 = arith.addf %2, %4 : vector<64x128xf32>
    %c0_5 = arith.constant 0 : index
    %c0_6 = arith.constant 0 : index
    %6 = vector.load %arg4[%c0_5, %c0_6] : memref<64x128xf32, #tpu.memory_space<vmem>>, vector<64x128xf32>
    tpu.vector_store %arg4[%c0_5, %c0_6], %5 {strides = array<i32>} : memref<64x128xf32, #tpu.memory_space<vmem>>, vector<64x128xf32>,
    return
  }
  func.func @transform_0(%arg0: i32) -> (i32, i32) {
    %c0_i32 = arith.constant 0 : i32
    %c0_i32_0 = arith.constant 0 : i32
    return %arg0, %c0_i32 : i32, i32
  }
  func.func @transform_1(%arg0: i32) -> (i32, i32) {
    %c0_i32 = arith.constant 0 : i32
    %c0_i32_0 = arith.constant 0 : i32
    %c0_i32_1 = arith.constant 0 : i32
    return %c0_i32, %c0_i32_0 : i32, i32
  }
  func.func @transform_2(%arg0: i32) -> (i32, i32) {
    %c0_i32 = arith.constant 0 : i32
    %c0_i32_0 = arith.constant 0 : i32
    %c0_i32_1 = arith.constant 0 : i32
    return %c0_i32, %c0_i32_0 : i32, i32
  }
  func.func @transform_3(%arg0: i32) -> (i32, i32) {
    %c0_i32 = arith.constant 0 : i32
    %c0_i32_0 = arith.constant 0 : i32
    return %arg0, %c0_i32 : i32, i32
  }
}

module attributes {stable_mosaic.version = 11 : i64} {
  func.func @_fused_head_kernel(%arg0: i32, %arg1: memref<16x72xf32, #tpu.memory_space<vmem>>, %arg2: memref<72x128xf32, #tpu.memory_space<vmem>>, %arg3: memref<1x128xf32, #tpu.memory_space<vmem>>, %arg4: memref<16x128xf32, #tpu.memory_space<vmem>>) attributes {dimension_semantics = [#tpu.dimension_semantics<parallel>], iteration_bounds = array<i64: 2>, scalar_prefetch = 0 : i64, scratch_operands = 0 : i64, tpu.core_type = #tpu.core_type<tc>, window_params = [{transform_indices = @transform_0, window_bounds = array<i64: 16, 72>}, {pipeline_mode = #tpu.pipeline_mode<synchronous>, transform_indices = @transform_1, window_bounds = array<i64: 72, 128>}, {pipeline_mode = #tpu.pipeline_mode<synchronous>, transform_indices = @transform_2, window_bounds = array<i64: 1, 128>}, {transform_indices = @transform_3, window_bounds = array<i64: 16, 128>}]} {
    %c0 = arith.constant 0 : index
    %c0_0 = arith.constant 0 : index
    %0 = vector.load %arg1[%c0, %c0_0] : memref<16x72xf32, #tpu.memory_space<vmem>>, vector<16x72xf32>
    %c0_1 = arith.constant 0 : index
    %c0_2 = arith.constant 0 : index
    %1 = vector.load %arg2[%c0_1, %c0_2] : memref<72x128xf32, #tpu.memory_space<vmem>>, vector<72x128xf32>
    %cst = arith.constant dense<0.000000e+00> : vector<16x128xf32>
    %2 = tpu.matmul %0, %1, %cst {dimension_numbers = #tpu.dot_dimension_numbers<[1], [0], [0], [1], [0, 0, 1, 1], [], []>} : vector<16x72xf32>, vector<72x128xf32>, vector<16x128xf32> -> vector<16x128xf32>
    %c0_3 = arith.constant 0 : index
    %c0_4 = arith.constant 0 : index
    %3 = vector.load %arg3[%c0_3, %c0_4] : memref<1x128xf32, #tpu.memory_space<vmem>>, vector<1x128xf32>
    %4 = vector.broadcast %3 : vector<1x128xf32> to vector<16x128xf32>
    %5 = arith.addf %2, %4 : vector<16x128xf32>
    %c0_5 = arith.constant 0 : index
    %c0_6 = arith.constant 0 : index
    %6 = vector.load %arg4[%c0_5, %c0_6] : memref<16x128xf32, #tpu.memory_space<vmem>>, vector<16x128xf32>
    tpu.vector_store %arg4[%c0_5, %c0_6], %5 {strides = array<i32>} : memref<16x128xf32, #tpu.memory_space<vmem>>, vector<16x128xf32>,
    return
  }
  func.func @transform_0(%arg0: i32) -> (i32, i32) {
    %c0_i32 = arith.constant 0 : i32
    %c0_i32_0 = arith.constant 0 : i32
    return %arg0, %c0_i32 : i32, i32
  }
  func.func @transform_1(%arg0: i32) -> (i32, i32) {
    %c0_i32 = arith.constant 0 : i32
    %c0_i32_0 = arith.constant 0 : i32
    %c0_i32_1 = arith.constant 0 : i32
    return %c0_i32, %c0_i32_0 : i32, i32
  }
  func.func @transform_2(%arg0: i32) -> (i32, i32) {
    %c0_i32 = arith.constant 0 : i32
    %c0_i32_0 = arith.constant 0 : i32
    %c0_i32_1 = arith.constant 0 : i32
    return %c0_i32, %c0_i32_0 : i32, i32
  }
  func.func @transform_3(%arg0: i32) -> (i32, i32) {
    %c0_i32 = arith.constant 0 : i32
    %c0_i32_0 = arith.constant 0 : i32
    return %arg0, %c0_i32 : i32, i32
  }
}

</mosaic_0001>

<llo_original>
// kernel: _forward_impl.2
$region0: #{_forward_impl.2}
  #allocation0 [shape = 'u32[]', space=smem, size = 0x4, offset = 0x4, fixed_abs, tag = 'smem constant byte address 0x4 - core index']
  #allocation1 [shape = 'u32[144,128]{1,0:T(1,128)}', space=vmem, size = 0x12000, scoped, tag = 'internal scratch']
  %s0 = inlined_call_operand.vmem [shape: f32[128,144], index: 0, kind: input, shape index: {}]
  %s1 = inlined_call_operand.vmem [shape: f32[144,128], index: 1, kind: input, shape index: {}]
  %s2 = inlined_call_operand.vmem [shape: f32[1,128], index: 2, kind: input, shape index: {}]
  %s3 = inlined_call_operand.vmem [shape: f32[128,128], index: 3, kind: output, shape index: {}]
  %s4 = sld [smem:[#allocation0]]
  $region45: #{_forward_impl.2} parent=0
    _
  %s6 = ssub.s32 1, %s4
  %s7 = scalar_select 0, %s6, %s4
  loop: start=0, step=1, limit=4
  $region2: #{_forward_impl.2} parent=0 // loop_pre_header
    _
  $region3: #{_forward_impl.2} parent=0 // loop_header
    %s9 = sphi 0, %s13
    %p10 = scmp.ge.s32.totalorder %s9, 4
    %s19 = sphi 0, %s21
    %s22 = sphi 0, %s19
    %s23 = sphi 0, %s22
    %s39 = sphi 0, %s23
    %s43 = sphi 0, %s43
    %s45 = sphi 0, %s43
    %s46 = sphi 0, %s45
    %s60 = sphi 0, %s46
    %s64 = sphi 0, %s64
    %s66 = sphi 0, %s64
    %s67 = sphi 0, %s66
    %s81 = sphi 0, %s67
    %s87 = sphi 0, %s89
    %s90 = sphi 0, %s87
    %s91 = sphi 0, %s90
    %s107 = sphi 0, %s91
  $region4: #{_forward_impl.2} parent=0 // loop_header_branch
    %12 = sbr.rel (%p10) target = $region8
  $region5: #{_forward_impl.2} parent=0 // loop_body
    %s14 = ssub.s32 %s9, 1
    %s15 = ssub.s32 %s9, 2
    %s16 = sadd.s32 %s9, 1
    %s17 = ssub.s32 %s9, %s16
    %p18 = scmp.eq.s32.totalorder %s17, 0
    %s20 = sadd.s32 %s19, 1
    %s21 = scalar_select %p18, %s19, %s20
    %p24 = pneg %p18
    %p25 = scmp.eq.s32.totalorder %s9, 1
    %p26 = por %p24, %p25
    %p27 = scmp.ne.s32.totalorder %s19, %s22
    %p28 = scmp.eq.s32.totalorder %s9, 0
    %p29 = por %p27, %p28
    %p30 = scmp.ne.s32.totalorder %s19, %s22
    %p31 = scmp.eq.s32.totalorder %s14, 1
    %p32 = por %p30, %p31
    %p33 = scmp.ne.s32.totalorder %s22, %s23
    %p34 = scmp.eq.s32.totalorder %s14, 0
    %p35 = por %p33, %p34
    %p36 = scmp.ne.s32.totalorder %s22, %s23
    %p37 = scmp.eq.s32.totalorder %s15, 1
    %p38 = por %p36, %p37
    %p40 = scmp.ne.s32.totalorder %s23, %s39
    %p41 = scmp.eq.s32.totalorder %s15, 0
    %p42 = por %p40, %p41
    %s44 = sadd.s32 %s43, 1
    %p47 = scmp.eq.s32.totalorder %s9, 1
    %p48 = scmp.ne.s32.totalorder %s43, %s45
    %p49 = scmp.eq.s32.totalorder %s9, 0
    %p50 = por %p48, %p49
    %p51 = scmp.ne.s32.totalorder %s43, %s45
    %p52 = scmp.eq.s32.totalorder %s14, 1
    %p53 = por %p51, %p52
    %p54 = scmp.ne.s32.totalorder %s45, %s46
    %p55 = scmp.eq.s32.totalorder %s14, 0
    %p56 = por %p54, %p55
    %p57 = scmp.ne.s32.totalorder %s45, %s46
    %p58 = scmp.eq.s32.totalorder %s15, 1
    %p59 = por %p57, %p58
    %p61 = scmp.ne.s32.totalorder %s46, %s60
    %p62 = scmp.eq.s32.totalorder %s15, 0
    %p63 = por %p61, %p62
    %s65 = sadd.s32 %s64, 1
    %p68 = scmp.eq.s32.totalorder %s9, 1
    %p69 = scmp.ne.s32.totalorder %s64, %s66
    %p70 = scmp.eq.s32.totalorder %s9, 0
    %p71 = por %p69, %p70
    %p72 = scmp.ne.s32.totalorder %s64, %s66
    %p73 = scmp.eq.s32.totalorder %s14, 1
    %p74 = por %p72, %p73
    %p75 = scmp.ne.s32.totalorder %s66, %s67
    %p76 = scmp.eq.s32.totalorder %s14, 0
    %p77 = por %p75, %p76
    %p78 = scmp.ne.s32.totalorder %s66, %s67
    %p79 = scmp.eq.s32.totalorder %s15, 1
    %p80 = por %p78, %p79
    %p82 = scmp.ne.s32.totalorder %s67, %s81
    %p83 = scmp.eq.s32.totalorder %s15, 0
    %p84 = por %p82, %p83
    %s85 = ssub.s32 %s9, %s16
    %p86 = scmp.eq.s32.totalorder %s85, 0
    %s88 = sadd.s32 %s87, 1
    %s89 = scalar_select %p86, %s87, %s88
    %p92 = pneg %p86
    %p93 = scmp.eq.s32.totalorder %s9, 1
    %p94 = por %p92, %p93
    %p95 = scmp.ne.s32.totalorder %s87, %s90
    %p96 = scmp.eq.s32.totalorder %s9, 0
    %p97 = por %p95, %p96
    %p98 = scmp.ne.s32.totalorder %s87, %s90
    %p99 = scmp.eq.s32.totalorder %s14, 1
    %p100 = por %p98, %p99
    %p101 = scmp.ne.s32.totalorder %s90, %s91
    %p102 = scmp.eq.s32.totalorder %s14, 0
    %p103 = por %p101, %p102
    %p104 = scmp.ne.s32.totalorder %s90, %s91
    %p105 = scmp.eq.s32.totalorder %s15, 1
    %p106 = por %p104, %p105
    %p108 = scmp.ne.s32.totalorder %s91, %s107
    %p109 = scmp.eq.s32.totalorder %s15, 0
    %p110 = por %p108, %p109
    %p111 = scmp.le.s32.totalorder 1, %s9
    %p112 = scmp.lt.s32.totalorder %s9, 3
    %p113 = pnand %p111, %p112
    %p114 = pneg %p113
    // Predicated region
    $region9: #{_forward_impl.2} parent=5 // pred_check
      _
    $region10: #{_forward_impl.2} parent=5 // pred_check_branch
      %116 = sbr.rel (%p113) target = $region12
    $region11: #{_forward_impl.2} parent=5 // pred_region
      %s117 = ssub.s32 %s9, 1
      // Predicated region
      $region13: #{_forward_impl.2} parent=11 // pred_check
        %p118 = pneg %p56
      $region14: #{_forward_impl.2} parent=11 // pred_check_branch
        %120 = sbr.rel (%p118) target = $region16
      $region15: #{_forward_impl.2} parent=11 // pred_region
        _
      $region16: #{_forward_impl.2} parent=11 // pred_fallthru
        _
      // Predicated region
      $region17: #{_forward_impl.2} parent=11 // pred_check
        %p121 = pneg %p77
      $region18: #{_forward_impl.2} parent=11 // pred_check_branch
        %123 = sbr.rel (%p121) target = $region20
      $region19: #{_forward_impl.2} parent=11 // pred_region
        _
      $region20: #{_forward_impl.2} parent=11 // pred_fallthru
        _
    $region12: #{_forward_impl.2} parent=5 // pred_fallthru
      _
    %p124 = scmp.lt.s32.totalorder %s9, 2
    // Predicated region
    $region21: #{_forward_impl.2} parent=5 // pred_check
      %p125 = pneg %p124
    $region22: #{_forward_impl.2} parent=5 // pred_check_branch
      %127 = sbr.rel (%p125) target = $region24
    $region23: #{_forward_impl.2} parent=5 // pred_region
      // Predicated region
      $region25: #{_forward_impl.2} parent=23 // pred_check
        %p128 = pneg %p29
      $region26: #{_forward_impl.2} parent=23 // pred_check_branch
        %130 = sbr.rel (%p128) target = $region28
      $region27: #{_forward_impl.2} parent=23 // pred_region
        %s131 = smul.u32 8, %s9
        %p132 = scmp.lt.s32.totalorder %s131, 15
        %s133 = scalar_select %p132, %s131, 15
        %s134 = smul.addr %s133, 2
        %s135 = smul.addr %s134, 8
        %s136 = scalar_lea.vmem %s0, %s135
        %s137 = smul.u32 8, %s9
      $region28: #{_forward_impl.2} parent=23 // pred_fallthru
        _
    $region24: #{_forward_impl.2} parent=5 // pred_fallthru
      _
    %p138 = scmp.le.s32.totalorder 1, %s9
    %p139 = scmp.lt.s32.totalorder %s9, 3
    %p140 = pnand %p138, %p139
    %p141 = pneg %p140
    // Predicated region
    $region29: #{_forward_impl.2} parent=5 // pred_check
      _
    $region30: #{_forward_impl.2} parent=5 // pred_check_branch
      %143 = sbr.rel (%p140) target = $region32
    $region31: #{_forward_impl.2} parent=5 // pred_region
      %s144 = ssub.s32 %s9, 1
      %s145 = smul.u32 8, %s14
      %p146 = scmp.lt.s32.totalorder %s145, 15
      %s147 = scalar_select %p146, %s145, 15
      %s148 = smul.addr %s147, 2
      %s149 = smul.addr %s148, 8
      %s150 = scalar_lea.vmem %s0, %s149
      %p151 = pneg %p35
      %p152 = pneg %p32
      %p153 = pneg %p56
      %p154 = pneg %p53
      %p155 = pneg %p77
      %p156 = pneg %p74
      %p157 = pneg %p103
      %p158 = pneg %p100
      %s159 = smul.u32 8, %s14
      %p160 = scmp.lt.s32.totalorder %s159, 15
      %s161 = scalar_select %p160, %s159, 15
      %s162 = smul.addr %s161, 8
      %s163 = scalar_lea.vmem %s3, %s162
      %s164 = smul.u32 8, %s14
      %p165 = scmp.lt.s32.totalorder %s164, 15
      %s166 = scalar_select %p165, %s164, 15
      %s167 = smul.addr %s166, 2
      %s168 = smul.addr %s167, 8
      %s169 = scalar_lea.vmem %s0, %s168
      %s170 = smul.u32 8, %s14
      %s171 = smul.u32 8, %s14
      %p172 = scmp.lt.s32.totalorder %s171, 15
      %s173 = scalar_select %p172, %s171, 15
      %s174 = smul.addr %s173, 8
      %s175 = scalar_lea.vmem %s3, %s174
      %s176 = smul.u32 8, %s14
      %v177 = vld [vmem:[%s169] sm:$0xff]
      %v178 = vld [vmem:[%s169 + $0x8] sm:$0xff]
      %v179 = vld [vmem:[%s169 + $0x10] sm:$0xff]
      %v180 = vld [vmem:[%s169 + $0x18] sm:$0xff]
      %v181 = vld [vmem:[%s169 + $0x20] sm:$0xff]
      %v182 = vld [vmem:[%s169 + $0x28] sm:$0xff]
      %v183 = vld [vmem:[%s169 + $0x30] sm:$0xff]
      %v184 = vld [vmem:[%s169 + $0x38] sm:$0xff]
      %v185 = vld [vmem:[%s169 + $0x40] sm:$0xff]
      %v186 = vld [vmem:[%s169 + $0x48] sm:$0xff]
      %v187 = vld [vmem:[%s169 + $0x50] sm:$0xff]
      %v188 = vld [vmem:[%s169 + $0x58] sm:$0xff]
      %v189 = vld [vmem:[%s169 + $0x60] sm:$0xff]
      %v190 = vld [vmem:[%s169 + $0x68] sm:$0xff]
      %v191 = vld [vmem:[%s169 + $0x70] sm:$0xff]
      %v192 = vld [vmem:[%s169 + $0x78] sm:$0xff]
      %v193 = vld [vmem:[%s1] sm:$0xff]
      %v194 = vld [vmem:[%s1 + $0x8] sm:$0xff]
      %v195 = vld [vmem:[%s1 + $0x10] sm:$0xff]
      %v196 = vld [vmem:[%s1 + $0x18] sm:$0xff]
      %v197 = vld [vmem:[%s1 + $0x20] sm:$0xff]
      %v198 = vld [vmem:[%s1 + $0x28] sm:$0xff]
      %v199 = vld [vmem:[%s1 + $0x30] sm:$0xff]
      %v200 = vld [vmem:[%s1 + $0x38] sm:$0xff]
      %v201 = vld [vmem:[%s1 + $0x40] sm:$0xff]
      %v202 = vld [vmem:[%s1 + $0x48] sm:$0xff]
      %v203 = vld [vmem:[%s1 + $0x50] sm:$0xff]
      %v204 = vld [vmem:[%s1 + $0x58] sm:$0xff]
      %v205 = vld [vmem:[%s1 + $0x60] sm:$0xff]
      %v206 = vld [vmem:[%s1 + $0x68] sm:$0xff]
      %v207 = vld [vmem:[%s1 + $0x70] sm:$0xff]
      %v208 = vld [vmem:[%s1 + $0x78] sm:$0xff]
      %v209 = vld [vmem:[%s1 + $0x80] sm:$0xff]
      %v210 = vld [vmem:[%s1 + $0x88] sm:$0xff]
      %v211 = vld [vmem:[%s2] sm:$0x1]
      %v213 = vlaneseq
      %v214 = vshrl.u32 %v213, 7
      %v215 = vsub.s32 0, %v214
      %v216 = vrot.slane %v211, %v215
      %vm218 = vcmask 130048
      %v220 = vsel %vm218, %v178, 0
      %v223 = vsel %vm218, %v180, 0
      %v226 = vsel %vm218, %v182, 0
      %v229 = vsel %vm218, %v184, 0
      %v232 = vsel %vm218, %v186, 0
      %v235 = vsel %vm218, %v188, 0
      %v238 = vsel %vm218, %v190, 0
      %v241 = vsel %vm218, %v192, 0
      %243 = vmatprep.subr.mxu0 0.0
      %244 = vmatpush1.msra.mxu0 %v208
      %245 = vmatprep.subr.mxu0 0.0
      %246 = vmatpush1.msra.mxu0 %v207
      %247 = vmatprep.subr.mxu0 0.0
      %248 = vmatpush1.msra.mxu0 %v206
      %249 = vmatprep.subr.mxu0 0.0
      %250 = vmatpush1.msra.mxu0 %v205
      %251 = vmatprep.subr.mxu0 0.0
      %252 = vmatpush1.msra.mxu0 %v204
      %253 = vmatprep.subr.mxu0 0.0
      %254 = vmatpush1.msra.mxu0 %v203
      %255 = vmatprep.subr.mxu0 0.0
      %256 = vmatpush1.msra.mxu0 %v202
      %257 = vmatprep.subr.mxu0 0.0
      %258 = vmatpush1.msra.mxu0 %v201
      %259 = vmatprep.subr.mxu0 0.0
      %260 = vmatpush1.msra.mxu0 %v200
      %261 = vmatprep.subr.mxu0 0.0
      %262 = vmatpush1.msra.mxu0 %v199
      %263 = vmatprep.subr.mxu0 0.0
      %264 = vmatpush1.msra.mxu0 %v198
      %265 = vmatprep.subr.mxu0 0.0
      %266 = vmatpush1.msra.mxu0 %v197
      %267 = vmatprep.subr.mxu0 0.0
      %268 = vmatpush1.msra.mxu0 %v196
      %269 = vmatprep.subr.mxu0 0.0
      %270 = vmatpush1.msra.mxu0 %v195
      %271 = vmatprep.subr.mxu0 0.0
      %272 = vmatpush1.msra.mxu0 %v194
      %273 = vmatprep.subr.mxu0 0.0
      %274 = vmatpush1.msra.mxu0 %v193
      %275 = vmatprep.subr.mxu0 0.0
      %276 = vmatpush2.msra.mxu0 0.0
      %277 = vmatprep.subr.mxu0 0.0
      %278 = vmatpush2.msra.mxu0 0.0
      %279 = vmatprep.subr.mxu0 0.0
      %280 = vmatpush2.msra.mxu0 0.0
      %281 = vmatprep.subr.mxu0 0.0
      %282 = vmatpush2.msra.mxu0 0.0
      %283 = vmatprep.subr.mxu0 0.0
      %284 = vmatpush2.msra.mxu0 0.0
      %285 = vmatprep.subr.mxu0 0.0
      %286 = vmatpush2.msra.mxu0 0.0
      %287 = vmatprep.subr.mxu0 0.0
      %288 = vmatpush2.msra.mxu0 0.0
      %289 = vmatprep.subr.mxu0 0.0
      %290 = vmatpush2.msra.mxu0 0.0
      %291 = vmatprep.subr.mxu0 0.0
      %292 = vmatpush2.msra.mxu0 0.0
      %293 = vmatprep.subr.mxu0 0.0
      %294 = vmatpush2.msra.mxu0 0.0
      %295 = vmatprep.subr.mxu0 0.0
      %296 = vmatpush2.msra.mxu0 0.0
      %297 = vmatprep.subr.mxu0 0.0
      %298 = vmatpush2.msra.mxu0 0.0
      %299 = vmatprep.subr.mxu0 0.0
      %300 = vmatpush2.msra.mxu0 0.0
      %301 = vmatprep.subr.mxu0 0.0
      %302 = vmatpush2.msra.mxu0 0.0
      %303 = vmatprep.subr.mxu0 0.0
      %304 = vmatpush2.msra.mxu0 %v210
      %305 = vmatprep.subr.mxu0 0.0
      %306 = vmatpush2.msra.mxu0 %v209
      %307 = vmatprep.mubr.f32.mxu0 %v220
      %308 = vmatmul.mubr.f32.gmra.mxu0 %v177
      %v309 = vpop.f32.mrf.mxu0
      %v310 = vadd.f32 %v216, %v309
      %v311 = vpop.f32.mrf.mxu0
      %312 = vmatprep.mubr.f32.mxu0 %v223
      %313 = vmatmul.mubr.f32.gmra.mxu0 %v179
      %v314 = vpop.f32.mrf.mxu0
      %v315 = vadd.f32 %v216, %v314
      %v316 = vpop.f32.mrf.mxu0
      %317 = vmatprep.mubr.f32.mxu0 %v226
      %318 = vmatmul.mubr.f32.gmra.mxu0 %v181
      %v319 = vpop.f32.mrf.mxu0
      %v320 = vadd.f32 %v216, %v319
      %v321 = vpop.f32.mrf.mxu0
      %322 = vmatprep.mubr.f32.mxu0 %v229
      %323 = vmatmul.mubr.f32.gmra.mxu0 %v183
      %v324 = vpop.f32.mrf.mxu0
      %v325 = vadd.f32 %v216, %v324
      %v326 = vpop.f32.mrf.mxu0
      %327 = vmatprep.mubr.f32.mxu0 %v232
      %328 = vmatmul.mubr.f32.gmra.mxu0 %v185
      %v329 = vpop.f32.mrf.mxu0
      %v330 = vadd.f32 %v216, %v329
      %v331 = vpop.f32.mrf.mxu0
      %332 = vmatprep.mubr.f32.mxu0 %v235
      %333 = vmatmul.mubr.f32.gmra.mxu0 %v187
      %v334 = vpop.f32.mrf.mxu0
      %v335 = vadd.f32 %v216, %v334
      %v336 = vpop.f32.mrf.mxu0
      %337 = vmatprep.mubr.f32.mxu0 %v238
      %338 = vmatmul.mubr.f32.gmra.mxu0 %v189
      %v339 = vpop.f32.mrf.mxu0
      %v340 = vadd.f32 %v216, %v339
      %v341 = vpop.f32.mrf.mxu0
      %342 = vmatprep.mubr.f32.mxu0 %v241
      %343 = vmatmul.mubr.f32.gmra.mxu0 %v191
      %v344 = vpop.f32.mrf.mxu0
      %v345 = vadd.f32 %v216, %v344
      %v346 = vpop.f32.mrf.mxu0
      %347 = vdwg.mxu0
      %348 = vst [vmem:[%s175] sm:$0xff] %v310
      %349 = vst [vmem:[%s175 + $0x8] sm:$0xff] %v315
      %350 = vst [vmem:[%s175 + $0x10] sm:$0xff] %v320
      %351 = vst [vmem:[%s175 + $0x18] sm:$0xff] %v325
      %352 = vst [vmem:[%s175 + $0x20] sm:$0xff] %v330
      %353 = vst [vmem:[%s175 + $0x28] sm:$0xff] %v335
      %354 = vst [vmem:[%s175 + $0x30] sm:$0xff] %v340
      %355 = vst [vmem:[%s175 + $0x38] sm:$0xff] %v345
      %s356 = smul.u32 8, %s14
      %p357 = scmp.lt.s32.totalorder %s356, 15
      %s358 = scalar_select %p357, %s356, 15
      %s359 = smul.addr %s358, 8
      %s360 = scalar_lea.vmem %s3, %s359
      // Predicated region
      $region33: #{_forward_impl.2} parent=31 // pred_check
        %p361 = pneg %p100
      $region34: #{_forward_impl.2} parent=31 // pred_check_branch
        %363 = sbr.rel (%p361) target = $region36
      $region35: #{_forward_impl.2} parent=31 // pred_region
        %s364 = smul.u32 8, %s14
      $region36: #{_forward_impl.2} parent=31 // pred_fallthru
        _
    $region32: #{_forward_impl.2} parent=5 // pred_fallthru
      _
    %p365 = scmp.le.s32.totalorder 2, %s9
    // Predicated region
    $region37: #{_forward_impl.2} parent=5 // pred_check
      %p366 = pneg %p365
    $region38: #{_forward_impl.2} parent=5 // pred_check_branch
      %368 = sbr.rel (%p366) target = $region40
    $region39: #{_forward_impl.2} parent=5 // pred_region
      %s369 = ssub.s32 %s9, 2
      // Predicated region
      $region41: #{_forward_impl.2} parent=39 // pred_check
        %p370 = pneg %p106
      $region42: #{_forward_impl.2} parent=39 // pred_check_branch
        %372 = sbr.rel (%p370) target = $region44
      $region43: #{_forward_impl.2} parent=39 // pred_region
        %s373 = smul.u32 8, %s15
        %p374 = scmp.lt.s32.totalorder %s373, 15
        %s375 = scalar_select %p374, %s373, 15
        %s376 = smul.addr %s375, 8
        %s377 = scalar_lea.vmem %s3, %s376
      $region44: #{_forward_impl.2} parent=39 // pred_fallthru
        _
    $region40: #{_forward_impl.2} parent=5 // pred_fallthru
      _
  $region6: #{_forward_impl.2} parent=0 // loop_footer
    %s13 = sadd.s32 1, %s9
  $region7: #{_forward_impl.2} parent=0 // loop_footer_branch
    %8 = sbr.rel target = $region3
  $region8: #{_forward_impl.2} parent=0 // loop_exit
    _

// kernel: _forward_impl.3
$region0: #{_forward_impl.3}
  #allocation0 [shape = 'u32[]', space=smem, size = 0x4, offset = 0x4, fixed_abs, tag = 'smem constant byte address 0x4 - core index']
  #allocation1 [shape = 'u32[144,128]{1,0:T(1,128)}', space=vmem, size = 0x12000, scoped, tag = 'internal scratch']
  %s0 = inlined_call_operand.vmem [shape: f32[32,72], index: 0, kind: input, shape index: {}]
  %s1 = inlined_call_operand.vmem [shape: f32[72,128], index: 1, kind: input, shape index: {}]
  %s2 = inlined_call_operand.vmem [shape: f32[1,128], index: 2, kind: input, shape index: {}]
  %s3 = inlined_call_operand.vmem [shape: f32[32,128], index: 3, kind: output, shape index: {}]
  %s4 = sld [smem:[#allocation0]]
  $region45: #{_forward_impl.3} parent=0
    _
  %s6 = ssub.s32 1, %s4
  %s7 = scalar_select 0, %s6, %s4
  loop: start=0, step=1, limit=4
  $region2: #{_forward_impl.3} parent=0 // loop_pre_header
    _
  $region3: #{_forward_impl.3} parent=0 // loop_header
    %s9 = sphi 0, %s13
    %p10 = scmp.ge.s32.totalorder %s9, 4
    %s19 = sphi 0, %s21
    %s22 = sphi 0, %s19
    %s23 = sphi 0, %s22
    %s39 = sphi 0, %s23
    %s43 = sphi 0, %s43
    %s45 = sphi 0, %s43
    %s46 = sphi 0, %s45
    %s60 = sphi 0, %s46
    %s64 = sphi 0, %s64
    %s66 = sphi 0, %s64
    %s67 = sphi 0, %s66
    %s81 = sphi 0, %s67
    %s87 = sphi 0, %s89
    %s90 = sphi 0, %s87
    %s91 = sphi 0, %s90
    %s107 = sphi 0, %s91
  $region4: #{_forward_impl.3} parent=0 // loop_header_branch
    %12 = sbr.rel (%p10) target = $region8
  $region5: #{_forward_impl.3} parent=0 // loop_body
    %s14 = ssub.s32 %s9, 1
    %s15 = ssub.s32 %s9, 2
    %s16 = sadd.s32 %s9, 1
    %s17 = ssub.s32 %s9, %s16
    %p18 = scmp.eq.s32.totalorder %s17, 0
    %s20 = sadd.s32 %s19, 1
    %s21 = scalar_select %p18, %s19, %s20
    %p24 = pneg %p18
    %p25 = scmp.eq.s32.totalorder %s9, 1
    %p26 = por %p24, %p25
    %p27 = scmp.ne.s32.totalorder %s19, %s22
    %p28 = scmp.eq.s32.totalorder %s9, 0
    %p29 = por %p27, %p28
    %p30 = scmp.ne.s32.totalorder %s19, %s22
    %p31 = scmp.eq.s32.totalorder %s14, 1
    %p32 = por %p30, %p31
    %p33 = scmp.ne.s32.totalorder %s22, %s23
    %p34 = scmp.eq.s32.totalorder %s14, 0
    %p35 = por %p33, %p34
    %p36 = scmp.ne.s32.totalorder %s22, %s23
    %p37 = scmp.eq.s32.totalorder %s15, 1
    %p38 = por %p36, %p37
    %p40 = scmp.ne.s32.totalorder %s23, %s39
    %p41 = scmp.eq.s32.totalorder %s15, 0
    %p42 = por %p40, %p41
    %s44 = sadd.s32 %s43, 1
    %p47 = scmp.eq.s32.totalorder %s9, 1
    %p48 = scmp.ne.s32.totalorder %s43, %s45
    %p49 = scmp.eq.s32.totalorder %s9, 0
    %p50 = por %p48, %p49
    %p51 = scmp.ne.s32.totalorder %s43, %s45
    %p52 = scmp.eq.s32.totalorder %s14, 1
    %p53 = por %p51, %p52
    %p54 = scmp.ne.s32.totalorder %s45, %s46
    %p55 = scmp.eq.s32.totalorder %s14, 0
    %p56 = por %p54, %p55
    %p57 = scmp.ne.s32.totalorder %s45, %s46
    %p58 = scmp.eq.s32.totalorder %s15, 1
    %p59 = por %p57, %p58
    %p61 = scmp.ne.s32.totalorder %s46, %s60
    %p62 = scmp.eq.s32.totalorder %s15, 0
    %p63 = por %p61, %p62
    %s65 = sadd.s32 %s64, 1
    %p68 = scmp.eq.s32.totalorder %s9, 1
    %p69 = scmp.ne.s32.totalorder %s64, %s66
    %p70 = scmp.eq.s32.totalorder %s9, 0
    %p71 = por %p69, %p70
    %p72 = scmp.ne.s32.totalorder %s64, %s66
    %p73 = scmp.eq.s32.totalorder %s14, 1
    %p74 = por %p72, %p73
    %p75 = scmp.ne.s32.totalorder %s66, %s67
    %p76 = scmp.eq.s32.totalorder %s14, 0
    %p77 = por %p75, %p76
    %p78 = scmp.ne.s32.totalorder %s66, %s67
    %p79 = scmp.eq.s32.totalorder %s15, 1
    %p80 = por %p78, %p79
    %p82 = scmp.ne.s32.totalorder %s67, %s81
    %p83 = scmp.eq.s32.totalorder %s15, 0
    %p84 = por %p82, %p83
    %s85 = ssub.s32 %s9, %s16
    %p86 = scmp.eq.s32.totalorder %s85, 0
    %s88 = sadd.s32 %s87, 1
    %s89 = scalar_select %p86, %s87, %s88
    %p92 = pneg %p86
    %p93 = scmp.eq.s32.totalorder %s9, 1
    %p94 = por %p92, %p93
    %p95 = scmp.ne.s32.totalorder %s87, %s90
    %p96 = scmp.eq.s32.totalorder %s9, 0
    %p97 = por %p95, %p96
    %p98 = scmp.ne.s32.totalorder %s87, %s90
    %p99 = scmp.eq.s32.totalorder %s14, 1
    %p100 = por %p98, %p99
    %p101 = scmp.ne.s32.totalorder %s90, %s91
    %p102 = scmp.eq.s32.totalorder %s14, 0
    %p103 = por %p101, %p102
    %p104 = scmp.ne.s32.totalorder %s90, %s91
    %p105 = scmp.eq.s32.totalorder %s15, 1
    %p106 = por %p104, %p105
    %p108 = scmp.ne.s32.totalorder %s91, %s107
    %p109 = scmp.eq.s32.totalorder %s15, 0
    %p110 = por %p108, %p109
    %p111 = scmp.le.s32.totalorder 1, %s9
    %p112 = scmp.lt.s32.totalorder %s9, 3
    %p113 = pnand %p111, %p112
    %p114 = pneg %p113
    // Predicated region
    $region9: #{_forward_impl.3} parent=5 // pred_check
      _
    $region10: #{_forward_impl.3} parent=5 // pred_check_branch
      %116 = sbr.rel (%p113) target = $region12
    $region11: #{_forward_impl.3} parent=5 // pred_region
      %s117 = ssub.s32 %s9, 1
      // Predicated region
      $region13: #{_forward_impl.3} parent=11 // pred_check
        %p118 = pneg %p56
      $region14: #{_forward_impl.3} parent=11 // pred_check_branch
        %120 = sbr.rel (%p118) target = $region16
      $region15: #{_forward_impl.3} parent=11 // pred_region
        _
      $region16: #{_forward_impl.3} parent=11 // pred_fallthru
        _
      // Predicated region
      $region17: #{_forward_impl.3} parent=11 // pred_check
        %p121 = pneg %p77
      $region18: #{_forward_impl.3} parent=11 // pred_check_branch
        %123 = sbr.rel (%p121) target = $region20
      $region19: #{_forward_impl.3} parent=11 // pred_region
        _
      $region20: #{_forward_impl.3} parent=11 // pred_fallthru
        _
    $region12: #{_forward_impl.3} parent=5 // pred_fallthru
      _
    %p124 = scmp.lt.s32.totalorder %s9, 2
    // Predicated region
    $region21: #{_forward_impl.3} parent=5 // pred_check
      %p125 = pneg %p124
    $region22: #{_forward_impl.3} parent=5 // pred_check_branch
      %127 = sbr.rel (%p125) target = $region24
    $region23: #{_forward_impl.3} parent=5 // pred_region
      // Predicated region
      $region25: #{_forward_impl.3} parent=23 // pred_check
        %p128 = pneg %p29
      $region26: #{_forward_impl.3} parent=23 // pred_check_branch
        %130 = sbr.rel (%p128) target = $region28
      $region27: #{_forward_impl.3} parent=23 // pred_region
        %s131 = smul.u32 2, %s9
        %p132 = scmp.lt.s32.totalorder %s131, 3
        %s133 = scalar_select %p132, %s131, 3
        %s134 = smul.addr %s133, 8
        %s135 = scalar_lea.vmem %s0, %s134
        %s136 = smul.u32 2, %s9
      $region28: #{_forward_impl.3} parent=23 // pred_fallthru
        _
    $region24: #{_forward_impl.3} parent=5 // pred_fallthru
      _
    %p137 = scmp.le.s32.totalorder 1, %s9
    %p138 = scmp.lt.s32.totalorder %s9, 3
    %p139 = pnand %p137, %p138
    %p140 = pneg %p139
    // Predicated region
    $region29: #{_forward_impl.3} parent=5 // pred_check
      _
    $region30: #{_forward_impl.3} parent=5 // pred_check_branch
      %142 = sbr.rel (%p139) target = $region32
    $region31: #{_forward_impl.3} parent=5 // pred_region
      %s143 = ssub.s32 %s9, 1
      %s144 = smul.u32 2, %s14
      %p145 = scmp.lt.s32.totalorder %s144, 3
      %s146 = scalar_select %p145, %s144, 3
      %s147 = smul.addr %s146, 8
      %s148 = scalar_lea.vmem %s0, %s147
      %p149 = pneg %p35
      %p150 = pneg %p32
      %p151 = pneg %p56
      %p152 = pneg %p53
      %p153 = pneg %p77
      %p154 = pneg %p74
      %p155 = pneg %p103
      %p156 = pneg %p100
      %s157 = smul.u32 2, %s14
      %p158 = scmp.lt.s32.totalorder %s157, 3
      %s159 = scalar_select %p158, %s157, 3
      %s160 = smul.addr %s159, 8
      %s161 = scalar_lea.vmem %s3, %s160
      %s162 = smul.u32 2, %s14
      %p163 = scmp.lt.s32.totalorder %s162, 3
      %s164 = scalar_select %p163, %s162, 3
      %s165 = smul.addr %s164, 8
      %s166 = scalar_lea.vmem %s0, %s165
      %s167 = smul.u32 2, %s14
      %s168 = smul.u32 2, %s14
      %p169 = scmp.lt.s32.totalorder %s168, 3
      %s170 = scalar_select %p169, %s168, 3
      %s171 = smul.addr %s170, 8
      %s172 = scalar_lea.vmem %s3, %s171
      %s173 = smul.u32 2, %s14
      %v174 = vld [vmem:[%s166] sm:$0xff]
      %v175 = vld [vmem:[%s166 + $0x8] sm:$0xff]
      %v176 = vld [vmem:[%s1] sm:$0xff]
      %v177 = vld [vmem:[%s1 + $0x8] sm:$0xff]
      %v178 = vld [vmem:[%s1 + $0x10] sm:$0xff]
      %v179 = vld [vmem:[%s1 + $0x18] sm:$0xff]
      %v180 = vld [vmem:[%s1 + $0x20] sm:$0xff]
      %v181 = vld [vmem:[%s1 + $0x28] sm:$0xff]
      %v182 = vld [vmem:[%s1 + $0x30] sm:$0xff]
      %v183 = vld [vmem:[%s1 + $0x38] sm:$0xff]
      %v184 = vld [vmem:[%s1 + $0x40] sm:$0xff]
      %v185 = vld [vmem:[%s2] sm:$0x1]
      %v187 = vlaneseq
      %v188 = vshrl.u32 %v187, 7
      %v189 = vsub.s32 0, %v188
      %v190 = vrot.slane %v185, %v189
      %vm192 = vcmask 588800
      %v194 = vsel %vm192, %v174, 0
      %v197 = vsel %vm192, %v175, 0
      %199 = vmatprep.subr.mxu0 0.0
      %200 = vmatpush1.msra.mxu0 0.0
      %201 = vmatprep.subr.mxu0 0.0
      %202 = vmatpush1.msra.mxu0 0.0
      %203 = vmatprep.subr.mxu0 0.0
      %204 = vmatpush1.msra.mxu0 0.0
      %205 = vmatprep.subr.mxu0 0.0
      %206 = vmatpush1.msra.mxu0 0.0
      %207 = vmatprep.subr.mxu0 0.0
      %208 = vmatpush1.msra.mxu0 0.0
      %209 = vmatprep.subr.mxu0 0.0
      %210 = vmatpush1.msra.mxu0 0.0
      %211 = vmatprep.subr.mxu0 0.0
      %212 = vmatpush1.msra.mxu0 0.0
      %213 = vmatprep.subr.mxu0 0.0
      %214 = vmatpush1.msra.mxu0 %v184
      %215 = vmatprep.subr.mxu0 0.0
      %216 = vmatpush1.msra.mxu0 %v183
      %217 = vmatprep.subr.mxu0 0.0
      %218 = vmatpush1.msra.mxu0 %v182
      %219 = vmatprep.subr.mxu0 0.0
      %220 = vmatpush1.msra.mxu0 %v181
      %221 = vmatprep.subr.mxu0 0.0
      %222 = vmatpush1.msra.mxu0 %v180
      %223 = vmatprep.subr.mxu0 0.0
      %224 = vmatpush1.msra.mxu0 %v179
      %225 = vmatprep.subr.mxu0 0.0
      %226 = vmatpush1.msra.mxu0 %v178
      %227 = vmatprep.subr.mxu0 0.0
      %228 = vmatpush1.msra.mxu0 %v177
      %229 = vmatprep.subr.mxu0 0.0
      %230 = vmatpush1.msra.mxu0 %v176
      %231 = vmatprep.subr.mxu0 0.0
      %232 = vmatpush2.msra.mxu0 0.0
      %233 = vmatprep.subr.mxu0 0.0
      %234 = vmatpush2.msra.mxu0 0.0
      %235 = vmatprep.subr.mxu0 0.0
      %236 = vmatpush2.msra.mxu0 0.0
      %237 = vmatprep.subr.mxu0 0.0
      %238 = vmatpush2.msra.mxu0 0.0
      %239 = vmatprep.subr.mxu0 0.0
      %240 = vmatpush2.msra.mxu0 0.0
      %241 = vmatprep.subr.mxu0 0.0
      %242 = vmatpush2.msra.mxu0 0.0
      %243 = vmatprep.subr.mxu0 0.0
      %244 = vmatpush2.msra.mxu0 0.0
      %245 = vmatprep.subr.mxu0 0.0
      %246 = vmatpush2.msra.mxu0 0.0
      %247 = vmatprep.subr.mxu0 0.0
      %248 = vmatpush2.msra.mxu0 0.0
      %249 = vmatprep.subr.mxu0 0.0
      %250 = vmatpush2.msra.mxu0 0.0
      %251 = vmatprep.subr.mxu0 0.0
      %252 = vmatpush2.msra.mxu0 0.0
      %253 = vmatprep.subr.mxu0 0.0
      %254 = vmatpush2.msra.mxu0 0.0
      %255 = vmatprep.subr.mxu0 0.0
      %256 = vmatpush2.msra.mxu0 0.0
      %257 = vmatprep.subr.mxu0 0.0
      %258 = vmatpush2.msra.mxu0 0.0
      %259 = vmatprep.subr.mxu0 0.0
      %260 = vmatpush2.msra.mxu0 0.0
      %261 = vmatprep.subr.mxu0 0.0
      %262 = vmatpush2.msra.mxu0 0.0
      %263 = vmatprep.mubr.f32.mxu0 0.0
      %264 = vmatmul.mubr.f32.gmra.mxu0 %v194
      %v265 = vpop.f32.mrf.mxu0
      %v266 = vadd.f32 %v190, %v265
      %v267 = vpop.f32.mrf.mxu0
      %268 = vmatprep.mubr.f32.mxu0 0.0
      %269 = vmatmul.mubr.f32.gmra.mxu0 %v197
      %v270 = vpop.f32.mrf.mxu0
      %v271 = vadd.f32 %v190, %v270
      %v272 = vpop.f32.mrf.mxu0
      %273 = vdwg.mxu0
      %274 = vst [vmem:[%s172] sm:$0xff] %v266
      %275 = vst [vmem:[%s172 + $0x8] sm:$0xff] %v271
      %s276 = smul.u32 2, %s14
      %p277 = scmp.lt.s32.totalorder %s276, 3
      %s278 = scalar_select %p277, %s276, 3
      %s279 = smul.addr %s278, 8
      %s280 = scalar_lea.vmem %s3, %s279
      // Predicated region
      $region33: #{_forward_impl.3} parent=31 // pred_check
        %p281 = pneg %p100
      $region34: #{_forward_impl.3} parent=31 // pred_check_branch
        %283 = sbr.rel (%p281) target = $region36
      $region35: #{_forward_impl.3} parent=31 // pred_region
        %s284 = smul.u32 2, %s14
      $region36: #{_forward_impl.3} parent=31 // pred_fallthru
        _
    $region32: #{_forward_impl.3} parent=5 // pred_fallthru
      _
    %p285 = scmp.le.s32.totalorder 2, %s9
    // Predicated region
    $region37: #{_forward_impl.3} parent=5 // pred_check
      %p286 = pneg %p285
    $region38: #{_forward_impl.3} parent=5 // pred_check_branch
      %288 = sbr.rel (%p286) target = $region40
    $region39: #{_forward_impl.3} parent=5 // pred_region
      %s289 = ssub.s32 %s9, 2
      // Predicated region
      $region41: #{_forward_impl.3} parent=39 // pred_check
        %p290 = pneg %p106
      $region42: #{_forward_impl.3} parent=39 // pred_check_branch
        %292 = sbr.rel (%p290) target = $region44
      $region43: #{_forward_impl.3} parent=39 // pred_region
        %s293 = smul.u32 2, %s15
        %p294 = scmp.lt.s32.totalorder %s293, 3
        %s295 = scalar_select %p294, %s293, 3
        %s296 = smul.addr %s295, 8
        %s297 = scalar_lea.vmem %s3, %s296
      $region44: #{_forward_impl.3} parent=39 // pred_fallthru
        _
    $region40: #{_forward_impl.3} parent=5 // pred_fallthru
      _
  $region6: #{_forward_impl.3} parent=0 // loop_footer
    %s13 = sadd.s32 1, %s9
  $region7: #{_forward_impl.3} parent=0 // loop_footer_branch
    %8 = sbr.rel target = $region3
  $region8: #{_forward_impl.3} parent=0 // loop_exit
    _

</llo_original>
